<compile_context>
chip_gen: v6e
topology: v6e:2x2x1
jax: 0.10.0
libtpu: 0.0.40
codegen_flags: <defaults>
</compile_context>

<pallas_src>
import jax
import jax.numpy as jnp
from jax import lax
from jax.experimental import pallas as pl
from jax.experimental.pallas import tpu as pltpu

LANES = 128


def _round_up(a, b):
    return (a + b - 1) // b * b


def nsp_kernel(x_ref, w_ref, b_ref, o_ref):
    """One row-tile of the NSP head.

    x_ref: (TILE_N, D)   f32/bf16 VMEM -- activation tile (streamed)
    w_ref: (D, 128)      f32/bf16 VMEM -- (w1 - w0) in lane 0, zero elsewhere (resident)
    b_ref: (1,)          f32 SMEM      -- b1 - b0
    o_ref: (TILE_N, 2)   f32 VMEM      -- [logp0, logp1]
    """
    # Full-lane MXU matmul; only lane 0 carries the difference logit.
    y = jnp.dot(x_ref[...], w_ref[...], preferred_element_type=jnp.float32)
    d = y[:, 0:1] + b_ref[0]                      # (TILE_N, 1): d = y1 - y0

    # 2-class log-softmax via the difference logit:
    #   logp0 = -softplus(d),  logp1 = d - softplus(d)
    # Stable softplus(d) = max(d, 0) + log(1 + exp(-|d|)); elementwise VPU/EUP.
    sp = jnp.maximum(d, 0.0) + jnp.log(1.0 + jnp.exp(-jnp.abs(d)))

    # One select + one subtract assembles both log-probs into the 2-wide output.
    col = lax.broadcasted_iota(jnp.int32, o_ref.shape, 1)
    o_ref[...] = (jnp.where(col == 0, 0.0, d) - sp).astype(o_ref.dtype)


def next_sentence_prediction(x, weight, bias, *, tile_n=None):
    """BERT NSP head: LogSoftmax(Linear(d_model -> 2)(x)) over flattened rows.

    x: (..., D); weight: (2, D) (PyTorch nn.Linear layout); bias: (2,).
    Returns log-probabilities of shape (prod(leading dims), 2) in float32.
    """
    D = x.shape[-1]
    N = 1
    for s in x.shape[:-1]:
        N *= s
    x2d = x.reshape(N, D)                          # contiguous reshape: no HBM copy

    # Keep bf16 activations bf16 (HBM-read-bound); anything else runs in f32.
    if x2d.dtype not in (jnp.float32.dtype, jnp.bfloat16.dtype):
        x2d = x2d.astype(jnp.float32)
    xdtype = x2d.dtype
    itemsize = jnp.dtype(xdtype).itemsize
    sub = 16 if xdtype == jnp.bfloat16.dtype else 8   # sublane packing multiple

    # 2-class log-softmax only needs the difference logit d = y1 - y0.
    w_diff = (weight[1] - weight[0]).astype(jnp.float32)
    b_diff = (bias[1] - bias[0]).astype(jnp.float32).reshape(1)
    # Zero-pad to a full 128-lane RHS -> clean full-lane vmatmul, stays resident.
    w_pad = jnp.zeros((D, LANES), xdtype).at[:, 0].set(w_diff.astype(xdtype))

    if tile_n is None:
        # ~16 MiB for the double-buffered x tiles keeps every generation
        # (v5e 16 MiB default scoped, v7x 64 MiB physical) comfortable.
        budget = 16 * 1024 * 1024
        cap = 4096 if xdtype == jnp.bfloat16.dtype else 2048
        tile_n = max(sub, min(cap, (budget // (2 * itemsize * D)) // sub * sub))
    tile_n = _round_up(max(sub, min(tile_n, _round_up(N, sub))), sub)

    grid = (pl.cdiv(N, tile_n),)                   # ragged tail handled by Pallas

    # Double-buffered x + resident weight + double-buffered f32 output + slack.
    vmem_bytes = (2 * tile_n * D * itemsize
                  + D * LANES * itemsize
                  + 2 * tile_n * 2 * 4)
    vmem_limit = int(min(max(vmem_bytes + (2 << 20), 16 << 20), 64 << 20))

    out = pl.pallas_call(
        nsp_kernel,
        out_shape=jax.ShapeDtypeStruct((N, 2), jnp.float32),
        grid_spec=pl.GridSpec(
            grid=grid,
            in_specs=[
                pl.BlockSpec((tile_n, D), lambda i: (i, 0)),          # streamed rows
                pl.BlockSpec((D, LANES), lambda i: (0, 0)),           # resident weight
                pl.BlockSpec(memory_space=pltpu.MemorySpace.SMEM),    # scalar bias diff
            ],
            out_specs=pl.BlockSpec((tile_n, 2), lambda i: (i, 0)),
        ),
        compiler_params=pltpu.CompilerParams(
            dimension_semantics=("parallel",),      # shards rows across TCs on v7x
            vmem_limit_bytes=vmem_limit,
        ),
        cost_estimate=pl.CostEstimate(
            flops=2 * N * D * LANES + 8 * N,        # padded 128-lane RHS MXU work
            transcendentals=2 * N,
            bytes_accessed=N * D * itemsize + N * 2 * 4 + D * LANES * itemsize,
        ),
    )(x2d, w_pad, b_diff)
    return out


if __name__ == "__main__":
    # Small shapes consistent with the module: batch=2, seq=8, d_model=32.
    B, S, D = 2, 8, 32
    key = jax.random.PRNGKey(0)
    kx, kw, kb = jax.random.split(key, 3)

    x = jax.random.normal(kx, (B, S, D), dtype=jnp.float32)
    # Deterministic parameter init for nn.Linear(d_model, 2): weight (2, D), bias (2,)
    bound = 1.0 / (D ** 0.5)
    weight = jax.random.uniform(kw, (2, D), dtype=jnp.float32,
                                minval=-bound, maxval=bound)
    bias = jax.random.uniform(kb, (2,), dtype=jnp.float32,
                              minval=-bound, maxval=bound)

    out = next_sentence_prediction(x, weight, bias)
    jax.block_until_ready(out)

    # Reference check in plain JAX (mirrors the PyTorch forward).
    y_ref = x.reshape(-1, D) @ weight.T + bias
    ref = jax.nn.log_softmax(y_ref, axis=-1)
    assert out.shape == (B * S, 2)
    assert jnp.allclose(out, ref, atol=1e-5, rtol=1e-5), float(
        jnp.max(jnp.abs(out - ref)))

    print("KERNEL_OK")
</pallas_src>

<mosaic_0001>
module attributes {stable_mosaic.version = 11 : i64} {
  func.func @nsp_kernel(%arg0: i32, %arg1: memref<16x32xf32, #tpu.memory_space<vmem>>, %arg2: memref<32x128xf32, #tpu.memory_space<vmem>>, %arg3: memref<1xf32, #tpu.memory_space<smem>>, %arg4: memref<16x2xf32, #tpu.memory_space<vmem>>) attributes {dimension_semantics = [#tpu.dimension_semantics<parallel>], iteration_bounds = array<i64: 1>, scalar_prefetch = 0 : i64, scratch_operands = 0 : i64, tpu.core_type = #tpu.core_type<tc>, window_params = [{transform_indices = @transform_0, window_bounds = array<i64: 16, 32>}, {pipeline_mode = #tpu.pipeline_mode<synchronous>, transform_indices = @transform_1, window_bounds = array<i64: 32, 128>}, {transform_indices = @transform_2, window_bounds = array<i64: 1>}, {transform_indices = @transform_3, window_bounds = array<i64: 16, 2>}]} {
    %c0 = arith.constant 0 : index
    %c0_0 = arith.constant 0 : index
    %0 = vector.load %arg1[%c0, %c0_0] : memref<16x32xf32, #tpu.memory_space<vmem>>, vector<16x32xf32>
    %c0_1 = arith.constant 0 : index
    %c0_2 = arith.constant 0 : index
    %1 = vector.load %arg2[%c0_1, %c0_2] : memref<32x128xf32, #tpu.memory_space<vmem>>, vector<32x128xf32>
    %cst = arith.constant dense<0.000000e+00> : vector<16x128xf32>
    %2 = tpu.matmul %0, %1, %cst {dimension_numbers = #tpu.dot_dimension_numbers<[1], [0], [0], [1], [0, 0, 1, 1], [], []>} : vector<16x32xf32>, vector<32x128xf32>, vector<16x128xf32> -> vector<16x128xf32>
    %3 = vector.extract_strided_slice %2 {offsets = [0, 0], sizes = [16, 1], strides = [1, 1]} : vector<16x128xf32> to vector<16x1xf32>
    %c0_3 = arith.constant 0 : index
    %4 = memref.load %arg3[%c0_3] : memref<1xf32, #tpu.memory_space<smem>>
    %5 = vector.broadcast %4 : f32 to vector<16x1xf32>
    %6 = arith.addf %3, %5 : vector<16x1xf32>
    %cst_4 = arith.constant 0.000000e+00 : f32
    %7 = vector.broadcast %cst_4 : f32 to vector<16x1xf32>
    %8 = arith.maximumf %6, %7 : vector<16x1xf32>
    %9 = math.absf %6 : vector<16x1xf32>
    %cst_5 = arith.constant 0.000000e+00 : f32
    %10 = vector.broadcast %cst_5 : f32 to vector<16x1xf32>
    %11 = arith.subf %10, %9 : vector<16x1xf32>
    %12 = math.exp %11 : vector<16x1xf32>
    %cst_6 = arith.constant 1.000000e+00 : f32
    %13 = vector.broadcast %cst_6 : f32 to vector<16x1xf32>
    %14 = arith.addf %13, %12 : vector<16x1xf32>
    %15 = math.log %14 : vector<16x1xf32>
    %16 = arith.addf %8, %15 : vector<16x1xf32>
    %17 = tpu.iota {dimensions = array<i32: 1>} : vector<16x2xi32>
    %c0_i32 = arith.constant 0 : i32
    %18 = vector.broadcast %c0_i32 : i32 to vector<16x2xi32>
    %19 = arith.cmpi eq, %17, %18 : vector<16x2xi32>
    %cst_7 = arith.constant 0.000000e+00 : f32
    %20 = vector.broadcast %cst_7 : f32 to vector<16x2xf32>
    %21 = vector.shape_cast %6 : vector<16x1xf32> to vector<16x1xf32>
    %22 = vector.broadcast %21 : vector<16x1xf32> to vector<16x2xf32>
    %23 = arith.select %19, %20, %22 : vector<16x2xi1>, vector<16x2xf32>
    %24 = vector.broadcast %16 : vector<16x1xf32> to vector<16x2xf32>
    %25 = arith.subf %23, %24 : vector<16x2xf32>
    %c0_8 = arith.constant 0 : index
    %c0_9 = arith.constant 0 : index
    %26 = vector.load %arg4[%c0_8, %c0_9] : memref<16x2xf32, #tpu.memory_space<vmem>>, vector<16x2xf32>
    tpu.vector_store %arg4[%c0_8, %c0_9], %25 {strides = array<i32>} : memref<16x2xf32, #tpu.memory_space<vmem>>, vector<16x2xf32>,
    return
  }
  func.func @transform_0(%arg0: i32) -> (i32, i32) {
    %c0_i32 = arith.constant 0 : i32
    %c0_i32_0 = arith.constant 0 : i32
    return %arg0, %c0_i32 : i32, i32
  }
  func.func @transform_1(%arg0: i32) -> (i32, i32) {
    %c0_i32 = arith.constant 0 : i32
    %c0_i32_0 = arith.constant 0 : i32
    %c0_i32_1 = arith.constant 0 : i32
    return %c0_i32, %c0_i32_0 : i32, i32
  }
  func.func @transform_2(%arg0: i32) -> i32 {
    %c0_i32 = arith.constant 0 : i32
    %c0_i32_0 = arith.constant 0 : i32
    return %c0_i32 : i32
  }
  func.func @transform_3(%arg0: i32) -> (i32, i32) {
    %c0_i32 = arith.constant 0 : i32
    %c0_i32_0 = arith.constant 0 : i32
    return %arg0, %c0_i32 : i32, i32
  }
}

</mosaic_0001>

<llo_original>
// kernel: tpu_custom_call.1
$region0: #{tpu_custom_call.1}
  #allocation0 [shape = 'u32[]', space=smem, size = 0x4, offset = 0x4, fixed_abs, tag = 'smem constant byte address 0x4 - core index']
  #allocation1 [shape = 'u32[144,128]{1,0:T(1,128)}', space=vmem, size = 0x12000, scoped, tag = 'internal scratch']
  #allocation2 [shape = 'f32[1]{0:T(128)S(6)}', space=smem, size = 0x200, scoped, tag = 'scoped memory for tpu_custom_call.1']
  %s0 = inlined_call_operand.hbm [shape: f32[16,32], index: 0, kind: input, shape index: {}]
  %s1 = inlined_call_operand.hbm [shape: f32[32,128], index: 1, kind: input, shape index: {}]
  %s2 = inlined_call_operand.<no memory space> [shape: f32[1], index: 2, kind: input, shape index: {}]
  %s3 = inlined_call_operand.vmem [shape: f32[16,2], index: 3, kind: output, shape index: {}]
  %s4 = sld [smem:[#allocation0]]
  $region30: #{tpu_custom_call.1} parent=0
    _
  %s6 = ssub.s32 1, %s4
  %s7 = scalar_select 0, %s6, %s4
  %8 = sst [smem:[#allocation2]] %s2
  $region1: #{tpu_custom_call.1} parent=0
    #allocation3 [shape = 'u8[8192]{0}', space=vmem, size = 0x2000, scoped, tag = 'input window, operand 0, single buffered']
    #allocation4 [shape = 's32[1]{0}', space=sflag, size = 0x4, scoped, tag = 'scoped memory for tpu_custom_call.1']
    #allocation5 [shape = 'u8[16384]{0}', space=vmem, size = 0x4000, scoped, tag = 'input window, operand 1, single buffered']
    #allocation6 [shape = 's32[1]{0}', space=sflag, size = 0x4, scoped, tag = 'scoped memory for tpu_custom_call.1']
    %9 = vsyncpa [#allocation4], 0
    %10 = vsyncpa [#allocation6], 0
    // Predicated region
    $region2: #{tpu_custom_call.1} parent=1 // pred_check
      _
    $region3: #{tpu_custom_call.1} parent=1 // pred_check_branch
      %12 = sbr.rel (0) target = $region5
    $region4: #{tpu_custom_call.1} parent=1 // pred_region
      %s14 = ssub.s32 256, 256
      %15 = vsyncadd [#allocation4], %s14
      %s16 = sshll.u32 [#allocation3], 4
      %s17 = int_to_ptr.vmem [resolvable:$true] %s16
      %22 = dma.hbm_to_vmem [thread:$0]  %s0, 256, %s17, [#allocation4], 128, 128, 8
    $region5: #{tpu_custom_call.1} parent=1 // pred_fallthru
      _
    // Predicated region
    $region6: #{tpu_custom_call.1} parent=1 // pred_check
      _
    $region7: #{tpu_custom_call.1} parent=1 // pred_check_branch
      %24 = sbr.rel (0) target = $region9
    $region8: #{tpu_custom_call.1} parent=1 // pred_region
      %s26 = ssub.s32 512, 512
      %27 = vsyncadd [#allocation6], %s26
      %s28 = sshll.u32 [#allocation5], 4
      %s29 = int_to_ptr.vmem [resolvable:$true] %s28
      %34 = dma.hbm_to_vmem [thread:$0]  %s1, 512, %s29, [#allocation6], 128, 128, 8
    $region9: #{tpu_custom_call.1} parent=1 // pred_fallthru
      _
    // Predicated region
    $region10: #{tpu_custom_call.1} parent=1 // pred_check
      _
    $region11: #{tpu_custom_call.1} parent=1 // pred_check_branch
      %36 = sbr.rel (0) target = $region13
    $region12: #{tpu_custom_call.1} parent=1 // pred_region
      _
    $region13: #{tpu_custom_call.1} parent=1 // pred_fallthru
      _
    // Predicated region
    $region14: #{tpu_custom_call.1} parent=1 // pred_check
      _
    $region15: #{tpu_custom_call.1} parent=1 // pred_check_branch
      %38 = sbr.rel (0) target = $region17
    $region16: #{tpu_custom_call.1} parent=1 // pred_region
      %39 = dma.done [#allocation4], 256
    $region17: #{tpu_custom_call.1} parent=1 // pred_fallthru
      _
    // Predicated region
    $region18: #{tpu_custom_call.1} parent=1 // pred_check
      _
    $region19: #{tpu_custom_call.1} parent=1 // pred_check_branch
      %41 = sbr.rel (0) target = $region21
    $region20: #{tpu_custom_call.1} parent=1 // pred_region
      %42 = dma.done [#allocation6], 512
    $region21: #{tpu_custom_call.1} parent=1 // pred_fallthru
      _
    %v43 = vld [vmem:[#allocation3] sm:$0xff]
    %v44 = vld [vmem:[#allocation3 + $0x8] sm:$0xff]
    %v45 = vld [vmem:[#allocation5] sm:$0xff]
    %v46 = vld [vmem:[#allocation5 + $0x8] sm:$0xff]
    %v47 = vld [vmem:[#allocation5 + $0x10] sm:$0xff]
    %v48 = vld [vmem:[#allocation5 + $0x18] sm:$0xff]
    %vm49 = vcmask 261120
    %v51 = vsel %vm49, %v43, 0
    %v54 = vsel %vm49, %v44, 0
    %56 = vmatprep.subr.mxu0 0.0
    %57 = vmatpush1.msra.mxu0 0.0
    %58 = vmatprep.subr.mxu0 0.0
    %59 = vmatpush1.msra.mxu0 0.0
    %60 = vmatprep.subr.mxu0 0.0
    %61 = vmatpush1.msra.mxu0 0.0
    %62 = vmatprep.subr.mxu0 0.0
    %63 = vmatpush1.msra.mxu0 0.0
    %64 = vmatprep.subr.mxu0 0.0
    %65 = vmatpush1.msra.mxu0 0.0
    %66 = vmatprep.subr.mxu0 0.0
    %67 = vmatpush1.msra.mxu0 0.0
    %68 = vmatprep.subr.mxu0 0.0
    %69 = vmatpush1.msra.mxu0 0.0
    %70 = vmatprep.subr.mxu0 0.0
    %71 = vmatpush1.msra.mxu0 0.0
    %72 = vmatprep.subr.mxu0 0.0
    %73 = vmatpush1.msra.mxu0 0.0
    %74 = vmatprep.subr.mxu0 0.0
    %75 = vmatpush1.msra.mxu0 0.0
    %76 = vmatprep.subr.mxu0 0.0
    %77 = vmatpush1.msra.mxu0 0.0
    %78 = vmatprep.subr.mxu0 0.0
    %79 = vmatpush1.msra.mxu0 0.0
    %80 = vmatprep.subr.mxu0 0.0
    %81 = vmatpush1.msra.mxu0 %v48
    %82 = vmatprep.subr.mxu0 0.0
    %83 = vmatpush1.msra.mxu0 %v47
    %84 = vmatprep.subr.mxu0 0.0
    %85 = vmatpush1.msra.mxu0 %v46
    %86 = vmatprep.subr.mxu0 0.0
    %87 = vmatpush1.msra.mxu0 %v45
    %88 = vmatprep.subr.mxu0 0.0
    %89 = vmatpush2.msra.mxu0 0.0
    %90 = vmatprep.subr.mxu0 0.0
    %91 = vmatpush2.msra.mxu0 0.0
    %92 = vmatprep.subr.mxu0 0.0
    %93 = vmatpush2.msra.mxu0 0.0
    %94 = vmatprep.subr.mxu0 0.0
    %95 = vmatpush2.msra.mxu0 0.0
    %96 = vmatprep.subr.mxu0 0.0
    %97 = vmatpush2.msra.mxu0 0.0
    %98 = vmatprep.subr.mxu0 0.0
    %99 = vmatpush2.msra.mxu0 0.0
    %100 = vmatprep.subr.mxu0 0.0
    %101 = vmatpush2.msra.mxu0 0.0
    %102 = vmatprep.subr.mxu0 0.0
    %103 = vmatpush2.msra.mxu0 0.0
    %104 = vmatprep.subr.mxu0 0.0
    %105 = vmatpush2.msra.mxu0 0.0
    %106 = vmatprep.subr.mxu0 0.0
    %107 = vmatpush2.msra.mxu0 0.0
    %108 = vmatprep.subr.mxu0 0.0
    %109 = vmatpush2.msra.mxu0 0.0
    %110 = vmatprep.subr.mxu0 0.0
    %111 = vmatpush2.msra.mxu0 0.0
    %112 = vmatprep.subr.mxu0 0.0
    %113 = vmatpush2.msra.mxu0 0.0
    %114 = vmatprep.subr.mxu0 0.0
    %115 = vmatpush2.msra.mxu0 0.0
    %116 = vmatprep.subr.mxu0 0.0
    %117 = vmatpush2.msra.mxu0 0.0
    %118 = vmatprep.subr.mxu0 0.0
    %119 = vmatpush2.msra.mxu0 0.0
    %120 = vmatprep.mubr.f32.mxu0 0.0
    %121 = vmatmul.mubr.f32.gmra.mxu0 %v51
    %v122 = vpop.f32.mrf.mxu0
    %v123 = vadd.f32 0.0, %v122
    %v124 = vpop.f32.mrf.mxu0
    %125 = vmatprep.mubr.f32.mxu0 0.0
    %126 = vmatmul.mubr.f32.gmra.mxu0 %v54
    %v127 = vpop.f32.mrf.mxu0
    %v128 = vadd.f32 0.0, %v127
    %v129 = vpop.f32.mrf.mxu0
    %130 = vdwg.mxu0
    %s131 = sld [smem:[#allocation2]]
    %v132 = vstv %s131
    %v133 = vadd.f32 %v123, %v132
    %v134 = vadd.f32 %v128, %v132
    %v135 = vmax.f32 %v133, 0.0
    %v136 = vmax.f32 %v134, 0.0
    %v137 = vand.u32 2147483647, %v133
    %v138 = vand.u32 2147483647, %v134
    %v139 = vsub.f32 0.0, %v137
    %v140 = vsub.f32 0.0, %v138
    %v141 = vmul.f32 %v139, 1.442695
    %v142 = vpow.pop %v141
    %v143 = vmul.f32 %v140, 1.442695
    %v144 = vpow.pop %v143
    %v145 = vadd.f32 %v142, 1.0
    %v146 = vadd.f32 %v144, 1.0
    %v147 = vlog2.pop %v145
    %v148 = vmul.f32 %v147, 0.6931472
    %v149 = vlog2.pop %v146
    %v150 = vmul.f32 %v149, 0.6931472
    %v151 = vadd.f32 %v135, %v148
    %v152 = vadd.f32 %v136, %v150
    %v153 = vlaneseq
    %v154 = vand.u32 %v153, 127
    %vm155 = vcmp.eq.s32.totalorder %v154, 0
    %157 = vset.pattern.permute.xlu0 0
    %158 = vperm.xlu0 %157, %v133
    %v159 = vpop.permute.xlu0 %158
    %162 = vset.pattern.permute.xlu0 0
    %163 = vperm.xlu0 %162, %v134
    %v164 = vpop.permute.xlu0 %163
    %v166 = vsel %vm155, 0.0, %v159
    %v167 = vsel %vm155, 0.0, %v164
    %169 = vset.pattern.permute.xlu0 0
    %170 = vperm.xlu0 %169, %v151
    %v171 = vpop.permute.xlu0 %170
    %174 = vset.pattern.permute.xlu0 0
    %175 = vperm.xlu0 %174, %v152
    %v176 = vpop.permute.xlu0 %175
    %v178 = vsub.f32 %v166, %v171
    %v179 = vsub.f32 %v167, %v176
    %vm180 = vcmask 15360
    %181 = vst.msk [vmem:[%s3] sm:$0xff] %vm180, %v178
    %182 = vst.msk [vmem:[%s3 + $0x8] sm:$0xff] %vm180, %v179
    // Predicated region
    $region22: #{tpu_custom_call.1} parent=1 // pred_check
      _
    $region23: #{tpu_custom_call.1} parent=1 // pred_check_branch
      %184 = sbr.rel (0) target = $region25
    $region24: #{tpu_custom_call.1} parent=1 // pred_region
      _
    $region25: #{tpu_custom_call.1} parent=1 // pred_fallthru
      _
    // Predicated region
    $region26: #{tpu_custom_call.1} parent=1 // pred_check
      _
    $region27: #{tpu_custom_call.1} parent=1 // pred_check_branch
      %186 = sbr.rel (0) target = $region29
    $region28: #{tpu_custom_call.1} parent=1 // pred_region
      _
    $region29: #{tpu_custom_call.1} parent=1 // pred_fallthru
      _
    %187 = vsyncpa [#allocation4], 1
    %188 = vsyncpa [#allocation6], 1

</llo_original>
